<compile_context>
chip_gen: v7x
topology: tpu7x:2x2x1
jax: 0.10.0
libtpu: 0.0.40
codegen_flags: <defaults>
</compile_context>

<pallas_src>
import jax
import jax.numpy as jnp
from jax.experimental import pallas as pl
from jax.experimental.pallas import tpu as pltpu


def _fusion_kernel(w_ref, f_ref, o_ref, acc_ref):
    # w_ref:   (3,) softmax-normalized weights, SMEM, f32
    # f_ref:   (3, TB, TL, TD) fused feature tile for this (batch, D) block
    # o_ref:   (TB, TD) output tile (written only on the last L-chunk)
    # acc_ref: (3, TB, TD) running max per stream, f32, persists across L axis
    l = pl.program_id(2)
    nl = pl.num_programs(2)

    @pl.when(l == 0)
    def _():
        acc_ref[...] = jnp.full_like(acc_ref, -jnp.inf)

    # Max over the L chunk (sublane axis), then accumulate the running max.
    chunk_max = jnp.max(f_ref[...], axis=2).astype(jnp.float32)   # (3, TB, TD)
    acc_ref[...] = jnp.maximum(acc_ref[...], chunk_max)

    @pl.when(l == nl - 1)
    def _():
        acc = acc_ref[...]
        fused = w_ref[0] * acc[0] + w_ref[1] * acc[1] + w_ref[2] * acc[2]
        o_ref[...] = fused.astype(o_ref.dtype)


def _round_up(x, m):
    return ((x + m - 1) // m) * m


def adaptive_pool_fusion(features_list, weights):
    """features_list: list of 3 arrays (B, L, D); weights: (3,) raw params."""
    assert len(features_list) == 3
    f0, f1, f2 = features_list
    B, L, D = f0.shape
    dtype = f0.dtype

    # softmax over the 3 learnable weights (tiny glue op, plain JAX)
    norm_w = jax.nn.softmax(weights.astype(jnp.float32), axis=0)

    # Single contiguous slab -> one DMA per grid step instead of three.
    fstack = jnp.stack([f0, f1, f2], axis=0)                      # (3, B, L, D)

    itemsize = jnp.dtype(dtype).itemsize
    # Lane tile: multiple of 128 (lane-dense), capped at 512.
    TD = min(_round_up(D, 128), 512)
    # L chunk: multiple of 8 (sublane), capped so VMEM stays bounded for long L.
    TL = min(_round_up(L, 8), 512)
    # Batch tile: multiple of 8, sized so a fused (3, TB, TL, TD) input tile
    # stays <= ~6 MiB (~12 MiB double-buffered) -> safe even on 64 MiB v7x VMEM.
    budget = 6 * 1024 * 1024
    max_tb = max(1, budget // (3 * TL * TD * itemsize))
    max_tb = max(8, (max_tb // 8) * 8)
    TB = min(_round_up(B, 8), max_tb)

    B_pad = _round_up(B, TB)
    L_pad = _round_up(L, TL)
    D_pad = _round_up(D, TD)

    if (B_pad, L_pad, D_pad) != (B, L, D):
        # -inf padding along L keeps the max correct; padded batch/D entries
        # are garbage but are sliced off below.
        fstack = jnp.pad(
            fstack,
            ((0, 0), (0, B_pad - B), (0, L_pad - L), (0, D_pad - D)),
            constant_values=float("-inf"),
        )

    grid = (B_pad // TB, D_pad // TD, L_pad // TL)  # reduction (L) axis last

    out = pl.pallas_call(
        _fusion_kernel,
        out_shape=jax.ShapeDtypeStruct((B_pad, D_pad), dtype),
        grid_spec=pltpu.PrefetchScalarGridSpec(
            num_scalar_prefetch=0,
            grid=grid,
            in_specs=[
                pl.BlockSpec(memory_space=pltpu.MemorySpace.SMEM),      # (3,) weights
                pl.BlockSpec((3, TB, TL, TD), lambda b, d, l: (0, b, l, d)),
            ],
            out_specs=pl.BlockSpec((TB, TD), lambda b, d, l: (b, d)),
            scratch_shapes=[pltpu.VMEM((3, TB, TD), jnp.float32)],
        ),
        compiler_params=pltpu.CompilerParams(
            dimension_semantics=("parallel", "parallel", "arbitrary"),
            vmem_limit_bytes=48 * 1024 * 1024,
        ),
    )(norm_w, fstack)

    return out[:B, :D]


def reference(features_list, weights):
    norm_w = jax.nn.softmax(weights.astype(jnp.float32), axis=0)
    pooled = [jnp.max(f, axis=1) for f in features_list]
    return sum(w * f for w, f in zip(norm_w, pooled))


if __name__ == "__main__":
    key = jax.random.PRNGKey(0)
    B, L, D = 2, 8, 32
    k0, k1, k2 = jax.random.split(key, 3)
    f0 = jax.random.normal(k0, (B, L, D), dtype=jnp.float32)
    f1 = jax.random.normal(k1, (B, L, D), dtype=jnp.float32)
    f2 = jax.random.normal(k2, (B, L, D), dtype=jnp.float32)

    # nn.Parameter(torch.ones(3)) -> deterministic init of ones
    weights = jnp.ones((3,), dtype=jnp.float32)

    out = adaptive_pool_fusion([f0, f1, f2], weights)
    out = jax.block_until_ready(out)

    ref = reference([f0, f1, f2], weights)
    assert out.shape == (B, D)
    assert jnp.allclose(out, ref, atol=1e-5, rtol=1e-5), "mismatch vs reference"
    print("KERNEL_OK")
</pallas_src>

<mosaic_0001>
module attributes {stable_mosaic.version = 11 : i64} {
  func.func @_fusion_kernel(%arg0: i32, %arg1: i32, %arg2: i32, %arg3: memref<3xf32, #tpu.memory_space<smem>>, %arg4: memref<3x8x8x128xf32, #tpu.memory_space<vmem>>, %arg5: memref<8x128xf32, #tpu.memory_space<vmem>>, %arg6: memref<3x8x128xf32, #tpu.memory_space<vmem>>) attributes {dimension_semantics = [#tpu.dimension_semantics<parallel>, #tpu.dimension_semantics<parallel>, #tpu.dimension_semantics<arbitrary>], iteration_bounds = array<i64: 1, 1, 1>, scalar_prefetch = 0 : i64, scratch_operands = 1 : i64, tpu.core_type = #tpu.core_type<tc>, window_params = [{transform_indices = @transform_0, window_bounds = array<i64: 3>}, {transform_indices = @transform_1, window_bounds = array<i64: 3, 8, 8, 128>}, {transform_indices = @transform_2, window_bounds = array<i64: 8, 128>}]} {
    %c0_i32 = arith.constant 0 : i32
    %0 = arith.cmpi eq, %arg2, %c0_i32 : i32
    %1 = arith.extui %0 : i1 to i32
    %c0_i32_0 = arith.constant 0 : i32
    %2 = arith.cmpi ne, %1, %c0_i32_0 : i32
    scf.if %2 {
      %cst_12 = arith.constant 0xFF800000 : f32
      %11 = vector.broadcast %cst_12 : f32 to vector<3x8x128xf32>
      %c0_13 = arith.constant 0 : index
      %c0_14 = arith.constant 0 : index
      %c0_15 = arith.constant 0 : index
      %12 = vector.load %arg6[%c0_13, %c0_14, %c0_15] : memref<3x8x128xf32, #tpu.memory_space<vmem>>, vector<3x8x128xf32>
      tpu.vector_store %arg6[%c0_13, %c0_14, %c0_15], %11 {strides = array<i32>} : memref<3x8x128xf32, #tpu.memory_space<vmem>>, vector<3x8x128xf32>,
    } else {
    }
    %c0 = arith.constant 0 : index
    %c0_1 = arith.constant 0 : index
    %c0_2 = arith.constant 0 : index
    %c0_3 = arith.constant 0 : index
    %3 = vector.load %arg4[%c0, %c0_1, %c0_2, %c0_3] : memref<3x8x8x128xf32, #tpu.memory_space<vmem>>, vector<3x8x8x128xf32>
    %cst = arith.constant dense<0xFF800000> : vector<3x8x128xf32>
    %4 = vector.multi_reduction <maximumf>, %3, %cst [2] : vector<3x8x8x128xf32> to vector<3x8x128xf32>
    %c0_4 = arith.constant 0 : index
    %c0_5 = arith.constant 0 : index
    %c0_6 = arith.constant 0 : index
    %5 = vector.load %arg6[%c0_4, %c0_5, %c0_6] : memref<3x8x128xf32, #tpu.memory_space<vmem>>, vector<3x8x128xf32>
    %6 = arith.maximumf %5, %4 : vector<3x8x128xf32>
    %c0_7 = arith.constant 0 : index
    %c0_8 = arith.constant 0 : index
    %c0_9 = arith.constant 0 : index
    %7 = vector.load %arg6[%c0_7, %c0_8, %c0_9] : memref<3x8x128xf32, #tpu.memory_space<vmem>>, vector<3x8x128xf32>
    tpu.vector_store %arg6[%c0_7, %c0_8, %c0_9], %6 {strides = array<i32>} : memref<3x8x128xf32, #tpu.memory_space<vmem>>, vector<3x8x128xf32>,
    %c0_i32_10 = arith.constant 0 : i32
    %8 = arith.cmpi eq, %arg2, %c0_i32_10 : i32
    %9 = arith.extui %8 : i1 to i32
    %c0_i32_11 = arith.constant 0 : i32
    %10 = arith.cmpi ne, %9, %c0_i32_11 : i32
    scf.if %10 {
      %c0_12 = arith.constant 0 : index
      %c0_13 = arith.constant 0 : index
      %c0_14 = arith.constant 0 : index
      %11 = vector.load %arg6[%c0_12, %c0_13, %c0_14] : memref<3x8x128xf32, #tpu.memory_space<vmem>>, vector<3x8x128xf32>
      %c0_15 = arith.constant 0 : index
      %12 = memref.load %arg3[%c0_15] : memref<3xf32, #tpu.memory_space<smem>>
      %13 = vector.extract_strided_slice %11 {offsets = [0, 0, 0], sizes = [1, 8, 128], strides = [1, 1, 1]} : vector<3x8x128xf32> to vector<1x8x128xf32>
      %14 = vector.shape_cast %13 : vector<1x8x128xf32> to vector<8x128xf32>
      %15 = vector.broadcast %12 : f32 to vector<8x128xf32>
      %16 = arith.mulf %15, %14 : vector<8x128xf32>
      %c1 = arith.constant 1 : index
      %17 = memref.load %arg3[%c1] : memref<3xf32, #tpu.memory_space<smem>>
      %18 = vector.extract_strided_slice %11 {offsets = [1, 0, 0], sizes = [1, 8, 128], strides = [1, 1, 1]} : vector<3x8x128xf32> to vector<1x8x128xf32>
      %19 = vector.shape_cast %18 : vector<1x8x128xf32> to vector<8x128xf32>
      %20 = vector.broadcast %17 : f32 to vector<8x128xf32>
      %21 = arith.mulf %20, %19 : vector<8x128xf32>
      %22 = arith.addf %16, %21 : vector<8x128xf32>
      %c2 = arith.constant 2 : index
      %23 = memref.load %arg3[%c2] : memref<3xf32, #tpu.memory_space<smem>>
      %24 = vector.extract_strided_slice %11 {offsets = [2, 0, 0], sizes = [1, 8, 128], strides = [1, 1, 1]} : vector<3x8x128xf32> to vector<1x8x128xf32>
      %25 = vector.shape_cast %24 : vector<1x8x128xf32> to vector<8x128xf32>
      %26 = vector.broadcast %23 : f32 to vector<8x128xf32>
      %27 = arith.mulf %26, %25 : vector<8x128xf32>
      %28 = arith.addf %22, %27 : vector<8x128xf32>
      %c0_16 = arith.constant 0 : index
      %c0_17 = arith.constant 0 : index
      %29 = vector.load %arg5[%c0_16, %c0_17] : memref<8x128xf32, #tpu.memory_space<vmem>>, vector<8x128xf32>
      tpu.vector_store %arg5[%c0_16, %c0_17], %28 {strides = array<i32>} : memref<8x128xf32, #tpu.memory_space<vmem>>, vector<8x128xf32>,
    } else {
    }
    return
  }
  func.func @transform_0(%arg0: i32, %arg1: i32, %arg2: i32) -> i32 {
    %c0_i32 = arith.constant 0 : i32
    %c0_i32_0 = arith.constant 0 : i32
    return %c0_i32 : i32
  }
  func.func @transform_1(%arg0: i32, %arg1: i32, %arg2: i32) -> (i32, i32, i32, i32) {
    %c0_i32 = arith.constant 0 : i32
    %c0_i32_0 = arith.constant 0 : i32
    return %c0_i32, %arg0, %arg2, %arg1 : i32, i32, i32, i32
  }
  func.func @transform_2(%arg0: i32, %arg1: i32, %arg2: i32) -> (i32, i32) {
    %c0_i32 = arith.constant 0 : i32
    return %arg0, %arg1 : i32, i32
  }
}

</mosaic_0001>

<llo_original>
// kernel: tpu_custom_call.1
$region0: #{tpu_custom_call.1}
  #allocation0 [shape = 'u32[]', space=smem, size = 0x4, offset = 0x4, fixed_abs, tag = 'smem constant byte address 0x4 - core index']
  #allocation1 [shape = 'u32[144,128]{1,0:T(1,128)}', space=vmem, size = 0x12000, scoped, tag = 'internal scratch']
  #allocation2 [shape = 'f32[3,8,128]{2,1,0:T(8,128)}', space=vmem, size = 0x3000, scoped, tag = 'scratch operand']
  %s0 = inlined_call_operand.hbm [shape: f32[3], index: 0, kind: input, shape index: {}]
  %s1 = inlined_call_operand.hbm [shape: f32[3,8,8,128], index: 1, kind: input, shape index: {}]
  %s2 = inlined_call_operand.hbm [shape: f32[8,128], index: 2, kind: output, shape index: {}]
  %s3 = sld [smem:[#allocation0]]
  $region34: #{tpu_custom_call.1} parent=0
    _
  %s5 = ssub.s32 1, %s3
  %s6 = scalar_select 0, %s5, %s3
  $region1: #{tpu_custom_call.1} parent=0
    #allocation3 [shape = 'u8[512]{0}', space=smem, size = 0x200, scoped, tag = 'input window, operand 0, single buffered']
    #allocation4 [shape = 's32[1]{0}', space=sflag, size = 0x4, scoped, tag = 'scoped memory for tpu_custom_call.1']
    #allocation5 [shape = 's32[1]{0}', space=sflag, size = 0x4, scoped, tag = 'scoped memory for tpu_custom_call.1']
    #allocation6 [shape = 's32[1]{0}', space=sflag, size = 0x4, scoped, tag = 'scoped memory for tpu_custom_call.1']
    #allocation7 [shape = 'u8[98304]{0}', space=vmem, size = 0x18000, scoped, tag = 'input window, operand 1, single buffered']
    #allocation8 [shape = 'u8[4096]{0}', space=vmem, size = 0x1000, scoped, tag = 'output window, operand 0, single buffered']
    %7 = vsyncpa [#allocation6], 0
    %8 = vsyncpa [#allocation4], 0
    %9 = vsyncpa [#allocation5], 0
    // Predicated region
    $region2: #{tpu_custom_call.1} parent=1 // pred_check
      _
    $region3: #{tpu_custom_call.1} parent=1 // pred_check_branch
      %11 = sbr.rel (0) target = $region5
    $region4: #{tpu_custom_call.1} parent=1 // pred_region
      %s13 = ssub.s32 16, 16
      %14 = vsyncadd [#allocation6], %s13
      %17 = dma.hbm_to_smem %s0, 16, [#allocation3], [#allocation6]
    $region5: #{tpu_custom_call.1} parent=1 // pred_fallthru
      _
    // Predicated region
    $region6: #{tpu_custom_call.1} parent=1 // pred_check
      _
    $region7: #{tpu_custom_call.1} parent=1 // pred_check_branch
      %19 = sbr.rel (0) target = $region9
    $region8: #{tpu_custom_call.1} parent=1 // pred_region
      %s21 = ssub.s32 3072, 3072
      %22 = vsyncadd [#allocation4], %s21
      %s23 = sshll.u32 [#allocation7], 4
      %s24 = int_to_ptr.vmem [resolvable:$true] %s23
      %29 = dma.hbm_to_vmem [thread:$0]  %s1, 3072, %s24, [#allocation4], 128, 128, 8
    $region9: #{tpu_custom_call.1} parent=1 // pred_fallthru
      _
    // Predicated region
    $region10: #{tpu_custom_call.1} parent=1 // pred_check
      _
    $region11: #{tpu_custom_call.1} parent=1 // pred_check_branch
      %31 = sbr.rel (0) target = $region13
    $region12: #{tpu_custom_call.1} parent=1 // pred_region
      %32 = dma.done [#allocation6], 16
    $region13: #{tpu_custom_call.1} parent=1 // pred_fallthru
      _
    // Predicated region
    $region14: #{tpu_custom_call.1} parent=1 // pred_check
      _
    $region15: #{tpu_custom_call.1} parent=1 // pred_check_branch
      %34 = sbr.rel (0) target = $region17
    $region16: #{tpu_custom_call.1} parent=1 // pred_region
      %35 = dma.done [#allocation4], 3072
    $region17: #{tpu_custom_call.1} parent=1 // pred_fallthru
      _
    %36 = sfence
    %p37 = scmp.eq.s32.totalorder 0, 0
    // Predicated region
    $region18: #{tpu_custom_call.1} parent=1 // pred_check
      %p38 = pneg %p37
    $region19: #{tpu_custom_call.1} parent=1 // pred_check_branch
      %40 = sbr.rel (%p38) target = $region21
    $region20: #{tpu_custom_call.1} parent=1 // pred_region
      %41 = vst [vmem:[#allocation2] sm:$0xff] -inf
      %42 = vst [vmem:[#allocation2 + $0x8] sm:$0xff] -inf
      %43 = vst [vmem:[#allocation2 + $0x10] sm:$0xff] -inf
    $region21: #{tpu_custom_call.1} parent=1 // pred_fallthru
      _
    %v44 = vld [vmem:[#allocation7] sm:$0xff]
    %v45 = vld [vmem:[#allocation7 + $0x8] sm:$0xff]
    %v46 = vld [vmem:[#allocation7 + $0x10] sm:$0xff]
    %v47 = vld [vmem:[#allocation7 + $0x18] sm:$0xff]
    %v48 = vld [vmem:[#allocation7 + $0x20] sm:$0xff]
    %v49 = vld [vmem:[#allocation7 + $0x28] sm:$0xff]
    %v50 = vld [vmem:[#allocation7 + $0x30] sm:$0xff]
    %v51 = vld [vmem:[#allocation7 + $0x38] sm:$0xff]
    %v52 = vld [vmem:[#allocation7 + $0x40] sm:$0xff]
    %v53 = vld [vmem:[#allocation7 + $0x48] sm:$0xff]
    %v54 = vld [vmem:[#allocation7 + $0x50] sm:$0xff]
    %v55 = vld [vmem:[#allocation7 + $0x58] sm:$0xff]
    %v56 = vld [vmem:[#allocation7 + $0x60] sm:$0xff]
    %v57 = vld [vmem:[#allocation7 + $0x68] sm:$0xff]
    %v58 = vld [vmem:[#allocation7 + $0x70] sm:$0xff]
    %v59 = vld [vmem:[#allocation7 + $0x78] sm:$0xff]
    %v60 = vld [vmem:[#allocation7 + $0x80] sm:$0xff]
    %v61 = vld [vmem:[#allocation7 + $0x88] sm:$0xff]
    %v62 = vld [vmem:[#allocation7 + $0x90] sm:$0xff]
    %v63 = vld [vmem:[#allocation7 + $0x98] sm:$0xff]
    %v64 = vld [vmem:[#allocation7 + $0xa0] sm:$0xff]
    %v65 = vld [vmem:[#allocation7 + $0xa8] sm:$0xff]
    %v66 = vld [vmem:[#allocation7 + $0xb0] sm:$0xff]
    %v67 = vld [vmem:[#allocation7 + $0xb8] sm:$0xff]
    %v68 = vrot.slane %v44, 4
    %v69 = vmax.f32 %v44, %v68
    %v70 = vrot.slane %v69, 2
    %v71 = vmax.f32 %v69, %v70
    %v72 = vrot.slane %v71, 1
    %v73 = vmax.f32 %v71, %v72
    %v74 = vrot.slane %v45, 4
    %v75 = vmax.f32 %v45, %v74
    %v76 = vrot.slane %v75, 2
    %v77 = vmax.f32 %v75, %v76
    %v78 = vrot.slane %v77, 1
    %v79 = vmax.f32 %v77, %v78
    %v80 = vrot.slane %v46, 4
    %v81 = vmax.f32 %v46, %v80
    %v82 = vrot.slane %v81, 2
    %v83 = vmax.f32 %v81, %v82
    %v84 = vrot.slane %v83, 1
    %v85 = vmax.f32 %v83, %v84
    %v86 = vrot.slane %v47, 4
    %v87 = vmax.f32 %v47, %v86
    %v88 = vrot.slane %v87, 2
    %v89 = vmax.f32 %v87, %v88
    %v90 = vrot.slane %v89, 1
    %v91 = vmax.f32 %v89, %v90
    %v92 = vrot.slane %v48, 4
    %v93 = vmax.f32 %v48, %v92
    %v94 = vrot.slane %v93, 2
    %v95 = vmax.f32 %v93, %v94
    %v96 = vrot.slane %v95, 1
    %v97 = vmax.f32 %v95, %v96
    %v98 = vrot.slane %v49, 4
    %v99 = vmax.f32 %v49, %v98
    %v100 = vrot.slane %v99, 2
    %v101 = vmax.f32 %v99, %v100
    %v102 = vrot.slane %v101, 1
    %v103 = vmax.f32 %v101, %v102
    %v104 = vrot.slane %v50, 4
    %v105 = vmax.f32 %v50, %v104
    %v106 = vrot.slane %v105, 2
    %v107 = vmax.f32 %v105, %v106
    %v108 = vrot.slane %v107, 1
    %v109 = vmax.f32 %v107, %v108
    %v110 = vrot.slane %v51, 4
    %v111 = vmax.f32 %v51, %v110
    %v112 = vrot.slane %v111, 2
    %v113 = vmax.f32 %v111, %v112
    %v114 = vrot.slane %v113, 1
    %v115 = vmax.f32 %v113, %v114
    %v116 = vrot.slane %v52, 4
    %v117 = vmax.f32 %v52, %v116
    %v118 = vrot.slane %v117, 2
    %v119 = vmax.f32 %v117, %v118
    %v120 = vrot.slane %v119, 1
    %v121 = vmax.f32 %v119, %v120
    %v122 = vrot.slane %v53, 4
    %v123 = vmax.f32 %v53, %v122
    %v124 = vrot.slane %v123, 2
    %v125 = vmax.f32 %v123, %v124
    %v126 = vrot.slane %v125, 1
    %v127 = vmax.f32 %v125, %v126
    %v128 = vrot.slane %v54, 4
    %v129 = vmax.f32 %v54, %v128
    %v130 = vrot.slane %v129, 2
    %v131 = vmax.f32 %v129, %v130
    %v132 = vrot.slane %v131, 1
    %v133 = vmax.f32 %v131, %v132
    %v134 = vrot.slane %v55, 4
    %v135 = vmax.f32 %v55, %v134
    %v136 = vrot.slane %v135, 2
    %v137 = vmax.f32 %v135, %v136
    %v138 = vrot.slane %v137, 1
    %v139 = vmax.f32 %v137, %v138
    %v140 = vrot.slane %v56, 4
    %v141 = vmax.f32 %v56, %v140
    %v142 = vrot.slane %v141, 2
    %v143 = vmax.f32 %v141, %v142
    %v144 = vrot.slane %v143, 1
    %v145 = vmax.f32 %v143, %v144
    %v146 = vrot.slane %v57, 4
    %v147 = vmax.f32 %v57, %v146
    %v148 = vrot.slane %v147, 2
    %v149 = vmax.f32 %v147, %v148
    %v150 = vrot.slane %v149, 1
    %v151 = vmax.f32 %v149, %v150
    %v152 = vrot.slane %v58, 4
    %v153 = vmax.f32 %v58, %v152
    %v154 = vrot.slane %v153, 2
    %v155 = vmax.f32 %v153, %v154
    %v156 = vrot.slane %v155, 1
    %v157 = vmax.f32 %v155, %v156
    %v158 = vrot.slane %v59, 4
    %v159 = vmax.f32 %v59, %v158
    %v160 = vrot.slane %v159, 2
    %v161 = vmax.f32 %v159, %v160
    %v162 = vrot.slane %v161, 1
    %v163 = vmax.f32 %v161, %v162
    %v164 = vrot.slane %v60, 4
    %v165 = vmax.f32 %v60, %v164
    %v166 = vrot.slane %v165, 2
    %v167 = vmax.f32 %v165, %v166
    %v168 = vrot.slane %v167, 1
    %v169 = vmax.f32 %v167, %v168
    %v170 = vrot.slane %v61, 4
    %v171 = vmax.f32 %v61, %v170
    %v172 = vrot.slane %v171, 2
    %v173 = vmax.f32 %v171, %v172
    %v174 = vrot.slane %v173, 1
    %v175 = vmax.f32 %v173, %v174
    %v176 = vrot.slane %v62, 4
    %v177 = vmax.f32 %v62, %v176
    %v178 = vrot.slane %v177, 2
    %v179 = vmax.f32 %v177, %v178
    %v180 = vrot.slane %v179, 1
    %v181 = vmax.f32 %v179, %v180
    %v182 = vrot.slane %v63, 4
    %v183 = vmax.f32 %v63, %v182
    %v184 = vrot.slane %v183, 2
    %v185 = vmax.f32 %v183, %v184
    %v186 = vrot.slane %v185, 1
    %v187 = vmax.f32 %v185, %v186
    %v188 = vrot.slane %v64, 4
    %v189 = vmax.f32 %v64, %v188
    %v190 = vrot.slane %v189, 2
    %v191 = vmax.f32 %v189, %v190
    %v192 = vrot.slane %v191, 1
    %v193 = vmax.f32 %v191, %v192
    %v194 = vrot.slane %v65, 4
    %v195 = vmax.f32 %v65, %v194
    %v196 = vrot.slane %v195, 2
    %v197 = vmax.f32 %v195, %v196
    %v198 = vrot.slane %v197, 1
    %v199 = vmax.f32 %v197, %v198
    %v200 = vrot.slane %v66, 4
    %v201 = vmax.f32 %v66, %v200
    %v202 = vrot.slane %v201, 2
    %v203 = vmax.f32 %v201, %v202
    %v204 = vrot.slane %v203, 1
    %v205 = vmax.f32 %v203, %v204
    %v206 = vrot.slane %v67, 4
    %v207 = vmax.f32 %v67, %v206
    %v208 = vrot.slane %v207, 2
    %v209 = vmax.f32 %v207, %v208
    %v210 = vrot.slane %v209, 1
    %v211 = vmax.f32 %v209, %v210
    %v212 = vld [vmem:[#allocation2] sm:$0xff]
    %v213 = vld [vmem:[#allocation2 + $0x8] sm:$0xff]
    %v214 = vld [vmem:[#allocation2 + $0x10] sm:$0xff]
    %vm239 = vcmask 1041409
    %v240 = vsel %vm239, %v79, %v73
    %vm241 = vcmask 1042434
    %v242 = vsel %vm241, %v85, %v240
    %vm243 = vcmask 1043459
    %v244 = vsel %vm243, %v91, %v242
    %vm245 = vcmask 1044484
    %v246 = vsel %vm245, %v97, %v244
    %vm247 = vcmask 1045509
    %v248 = vsel %vm247, %v103, %v246
    %vm249 = vcmask 1046534
    %v250 = vsel %vm249, %v109, %v248
    %vm251 = vcmask 1047559
    %v252 = vsel %vm251, %v115, %v250
    %v253 = vsel %vm239, %v127, %v121
    %v254 = vsel %vm241, %v133, %v253
    %v255 = vsel %vm243, %v139, %v254
    %v256 = vsel %vm245, %v145, %v255
    %v257 = vsel %vm247, %v151, %v256
    %v258 = vsel %vm249, %v157, %v257
    %v259 = vsel %vm251, %v163, %v258
    %v260 = vsel %vm239, %v175, %v169
    %v261 = vsel %vm241, %v181, %v260
    %v262 = vsel %vm243, %v187, %v261
    %v263 = vsel %vm245, %v193, %v262
    %v264 = vsel %vm247, %v199, %v263
    %v265 = vsel %vm249, %v205, %v264
    %v266 = vsel %vm251, %v211, %v265
    %v270 = vmax.f32 %v212, %v252
    %v271 = vmax.f32 %v213, %v259
    %v272 = vmax.f32 %v214, %v266
    %273 = vst [vmem:[#allocation2] sm:$0xff] %v270
    %274 = vst [vmem:[#allocation2 + $0x8] sm:$0xff] %v271
    %275 = vst [vmem:[#allocation2 + $0x10] sm:$0xff] %v272
    // Predicated region
    $region22: #{tpu_custom_call.1} parent=1 // pred_check
      %p276 = pneg %p37
    $region23: #{tpu_custom_call.1} parent=1 // pred_check_branch
      %278 = sbr.rel (%p276) target = $region25
    $region24: #{tpu_custom_call.1} parent=1 // pred_region
      %v279 = vld [vmem:[#allocation2] sm:$0xff]
      %v280 = vld [vmem:[#allocation2 + $0x8] sm:$0xff]
      %v281 = vld [vmem:[#allocation2 + $0x10] sm:$0xff]
      %s282 = sld [smem:[#allocation3]]
      %v283 = vstv %s282
      %v284 = vmul.f32 %v283, %v279
      %s285 = sld [smem:[#allocation3 + $0x1]]
      %v286 = vstv %s285
      %v287 = vmul.f32 %v286, %v280
      %v288 = vadd.f32 %v284, %v287
      %s289 = sld [smem:[#allocation3 + $0x2]]
      %v290 = vstv %s289
      %v291 = vmul.f32 %v290, %v281
      %v292 = vadd.f32 %v288, %v291
      %293 = vst [vmem:[#allocation8] sm:$0xff] %v292
    $region25: #{tpu_custom_call.1} parent=1 // pred_fallthru
      _
    // Predicated region
    $region26: #{tpu_custom_call.1} parent=1 // pred_check
      _
    $region27: #{tpu_custom_call.1} parent=1 // pred_check_branch
      %295 = sbr.rel (0) target = $region29
    $region28: #{tpu_custom_call.1} parent=1 // pred_region
      %s297 = ssub.s32 128, 128
      %298 = vsyncadd [#allocation5], %s297
      %s300 = sshll.u32 [#allocation8], 4
      %s301 = int_to_ptr.vmem [resolvable:$true] %s300
      %303 = dma.vmem_to_hbm [thread:$0]  %s301, 128, %s2, [#allocation5]
    $region29: #{tpu_custom_call.1} parent=1 // pred_fallthru
      _
    // Predicated region
    $region30: #{tpu_custom_call.1} parent=1 // pred_check
      _
    $region31: #{tpu_custom_call.1} parent=1 // pred_check_branch
      %305 = sbr.rel (0) target = $region33
    $region32: #{tpu_custom_call.1} parent=1 // pred_region
      %306 = dma.done [#allocation5], 128
    $region33: #{tpu_custom_call.1} parent=1 // pred_fallthru
      _
    %307 = vsyncpa [#allocation4], 1
    %308 = vsyncpa [#allocation5], 1
    %309 = vsyncpa [#allocation6], 1

</llo_original>
